<compile_context>
chip_gen: v5e
topology: v5e:2x2
jax: 0.10.0
libtpu: 0.0.40
codegen_flags: <defaults>
</compile_context>

<pallas_src>
import functools

import jax
import jax.numpy as jnp
from jax.experimental import pallas as pl
from jax.experimental.pallas import tpu as pltpu


def _mlp5_kernel(x_ref,
                 w1_ref, b1_ref,
                 w2_ref, b2_ref,
                 w3_ref, b3_ref,
                 w4_ref, b4_ref,
                 w5_ref, b5_ref,
                 o_ref):
    wb = (w1_ref, b1_ref, w2_ref, b2_ref, w3_ref, b3_ref,
          w4_ref, b4_ref, w5_ref, b5_ref)

    h = x_ref[...]  # bf16 activations feed the MXU
    for i in range(5):
        w = wb[2 * i][...]        # bf16 weights (MXU-native)
        b = wb[2 * i + 1][...]    # f32 bias
        # bf16 x bf16 -> f32 accumulation on the MXU; bias add in f32 on VPU.
        h = jnp.dot(h, w, preferred_element_type=jnp.float32) + b
        if i < 4:
            # tanh in f32 (EUP), then narrow back to bf16 for the next dot.
            h = jnp.tanh(h).astype(jnp.bfloat16)

    o_ref[...] = h.astype(o_ref.dtype)


@functools.partial(jax.jit, static_argnames=("block_b",))
def net5_forward(x, params, block_b=512):
    """x: (B, D0) float32. params: list of 5 (W_i, b_i) with W_i (Din, Dout)
    and b_i (1, Dout). Returns (B, D5) in x.dtype."""
    (w1, b1), (w2, b2), (w3, b3), (w4, b4), (w5, b5) = params
    B, d0 = x.shape
    d_out = w5.shape[1]
    out_dtype = x.dtype

    # Grid over the batch; pad B up to a multiple of block_b instead of
    # forcing the caller's batch size to be divisible.
    grid_b = pl.cdiv(B, block_b)
    b_pad = grid_b * block_b
    x_in = x if b_pad == B else jnp.pad(x, ((0, b_pad - B), (0, 0)))

    # bf16 matmul operands; biases stay f32 (added to the f32 accumulator).
    x_lo = x_in.astype(jnp.bfloat16)
    ws = [w.astype(jnp.bfloat16) for w in (w1, w2, w3, w4, w5)]
    bs = [b.astype(jnp.float32) for b in (b1, b2, b3, b4, b5)]

    def full_spec(shape):
        # Whole array as one block, same block every grid step, so the
        # weights/biases stay resident in VMEM across batch tiles.
        return pl.BlockSpec(shape, lambda i: (0,) * len(shape))

    in_specs = [pl.BlockSpec((block_b, d0), lambda i: (i, 0))]
    flat_wb = []
    for w, b in zip(ws, bs):
        in_specs.append(full_spec(w.shape))
        in_specs.append(full_spec(b.shape))
        flat_wb += [w, b]

    out_spec = pl.BlockSpec((block_b, d_out), lambda i: (i, 0))

    out = pl.pallas_call(
        _mlp5_kernel,
        out_shape=jax.ShapeDtypeStruct((b_pad, d_out), out_dtype),
        grid_spec=pl.GridSpec(
            grid=(grid_b,),
            in_specs=in_specs,
            out_specs=out_spec,
        ),
        compiler_params=pltpu.CompilerParams(
            dimension_semantics=("parallel",)),
    )(x_lo, *flat_wb)

    return out[:B] if b_pad != B else out


def init_net5_params(key, layer_sizes):
    """Deterministic init matching nn.Linear's U(-1/sqrt(fan_in), 1/sqrt(fan_in))."""
    params = []
    for i in range(5):
        fan_in, fan_out = layer_sizes[i], layer_sizes[i + 1]
        key, kw, kb = jax.random.split(key, 3)
        bound = 1.0 / jnp.sqrt(jnp.float32(fan_in))
        w = jax.random.uniform(kw, (fan_in, fan_out), jnp.float32,
                               minval=-bound, maxval=bound)
        b = jax.random.uniform(kb, (1, fan_out), jnp.float32,
                               minval=-bound, maxval=bound)
        params.append((w, b))
    return params


def net5_reference(x, params):
    """Pure-JAX f32 reference for the same forward pass."""
    h = x
    for i, (w, b) in enumerate(params):
        h = h @ w + b
        if i < 4:
            h = jnp.tanh(h)
    return h


if __name__ == "__main__":
    # Small shapes consistent with the module. batch is NOT a multiple of
    # block_b (exercises the padding path) and the grid has 2 steps
    # (exercises weight residency + the batch-tile index_map, and lets both
    # v7x TensorCores get work).
    layer_sizes = [32, 64, 64, 64, 64, 16]
    batch = 200
    block_b = 128

    key = jax.random.PRNGKey(0)
    key, kx = jax.random.split(key)
    x = jax.random.normal(kx, (batch, layer_sizes[0]), jnp.float32)
    params = init_net5_params(key, layer_sizes)

    out = net5_forward(x, params, block_b=block_b)
    out = jax.block_until_ready(out)

    ref = net5_reference(x, params)
    assert out.shape == (batch, layer_sizes[-1])
    # bf16 matmul operands (f32 accumulation) -> loosened tolerance vs f32 ref.
    assert jnp.allclose(out, ref, atol=1e-1, rtol=1e-1), "mismatch vs reference"

    print("KERNEL_OK")
</pallas_src>

<mosaic_0001>
module attributes {stable_mosaic.version = 11 : i64} {
  func.func @_mlp5_kernel(%arg0: i32, %arg1: memref<128x32xbf16, #tpu.memory_space<vmem>>, %arg2: memref<32x64xbf16, #tpu.memory_space<vmem>>, %arg3: memref<1x64xf32, #tpu.memory_space<vmem>>, %arg4: memref<64x64xbf16, #tpu.memory_space<vmem>>, %arg5: memref<1x64xf32, #tpu.memory_space<vmem>>, %arg6: memref<64x64xbf16, #tpu.memory_space<vmem>>, %arg7: memref<1x64xf32, #tpu.memory_space<vmem>>, %arg8: memref<64x64xbf16, #tpu.memory_space<vmem>>, %arg9: memref<1x64xf32, #tpu.memory_space<vmem>>, %arg10: memref<64x16xbf16, #tpu.memory_space<vmem>>, %arg11: memref<1x16xf32, #tpu.memory_space<vmem>>, %arg12: memref<128x16xf32, #tpu.memory_space<vmem>>) attributes {dimension_semantics = [#tpu.dimension_semantics<parallel>], iteration_bounds = array<i64: 2>, scalar_prefetch = 0 : i64, scratch_operands = 0 : i64, tpu.core_type = #tpu.core_type<tc>, window_params = [{transform_indices = @transform_0, window_bounds = array<i64: 128, 32>}, {pipeline_mode = #tpu.pipeline_mode<synchronous>, transform_indices = @transform_1, window_bounds = array<i64: 32, 64>}, {pipeline_mode = #tpu.pipeline_mode<synchronous>, transform_indices = @transform_2, window_bounds = array<i64: 1, 64>}, {pipeline_mode = #tpu.pipeline_mode<synchronous>, transform_indices = @transform_3, window_bounds = array<i64: 64, 64>}, {pipeline_mode = #tpu.pipeline_mode<synchronous>, transform_indices = @transform_4, window_bounds = array<i64: 1, 64>}, {pipeline_mode = #tpu.pipeline_mode<synchronous>, transform_indices = @transform_5, window_bounds = array<i64: 64, 64>}, {pipeline_mode = #tpu.pipeline_mode<synchronous>, transform_indices = @transform_6, window_bounds = array<i64: 1, 64>}, {pipeline_mode = #tpu.pipeline_mode<synchronous>, transform_indices = @transform_7, window_bounds = array<i64: 64, 64>}, {pipeline_mode = #tpu.pipeline_mode<synchronous>, transform_indices = @transform_8, window_bounds = array<i64: 1, 64>}, {pipeline_mode = #tpu.pipeline_mode<synchronous>, transform_indices = @transform_9, window_bounds = array<i64: 64, 16>}, {pipeline_mode = #tpu.pipeline_mode<synchronous>, transform_indices = @transform_10, window_bounds = array<i64: 1, 16>}, {transform_indices = @transform_11, window_bounds = array<i64: 128, 16>}]} {
    %c0 = arith.constant 0 : index
    %c0_0 = arith.constant 0 : index
    %0 = vector.load %arg1[%c0, %c0_0] : memref<128x32xbf16, #tpu.memory_space<vmem>>, vector<128x32xbf16>
    %c0_1 = arith.constant 0 : index
    %c0_2 = arith.constant 0 : index
    %1 = vector.load %arg2[%c0_1, %c0_2] : memref<32x64xbf16, #tpu.memory_space<vmem>>, vector<32x64xbf16>
    %c0_3 = arith.constant 0 : index
    %c0_4 = arith.constant 0 : index
    %2 = vector.load %arg3[%c0_3, %c0_4] : memref<1x64xf32, #tpu.memory_space<vmem>>, vector<1x64xf32>
    %cst = arith.constant dense<0.000000e+00> : vector<128x64xf32>
    %3 = tpu.matmul %0, %1, %cst {dimension_numbers = #tpu.dot_dimension_numbers<[1], [0], [0], [1], [0, 0, 1, 1], [], []>} : vector<128x32xbf16>, vector<32x64xbf16>, vector<128x64xf32> -> vector<128x64xf32>
    %4 = vector.broadcast %2 : vector<1x64xf32> to vector<128x64xf32>
    %5 = arith.addf %3, %4 : vector<128x64xf32>
    %6 = math.tanh %5 : vector<128x64xf32>
    %7 = arith.truncf %6 : vector<128x64xf32> to vector<128x64xbf16>
    %c0_5 = arith.constant 0 : index
    %c0_6 = arith.constant 0 : index
    %8 = vector.load %arg4[%c0_5, %c0_6] : memref<64x64xbf16, #tpu.memory_space<vmem>>, vector<64x64xbf16>
    %c0_7 = arith.constant 0 : index
    %c0_8 = arith.constant 0 : index
    %9 = vector.load %arg5[%c0_7, %c0_8] : memref<1x64xf32, #tpu.memory_space<vmem>>, vector<1x64xf32>
    %cst_9 = arith.constant dense<0.000000e+00> : vector<128x64xf32>
    %10 = tpu.matmul %7, %8, %cst_9 {dimension_numbers = #tpu.dot_dimension_numbers<[1], [0], [0], [1], [0, 0, 1, 1], [], []>} : vector<128x64xbf16>, vector<64x64xbf16>, vector<128x64xf32> -> vector<128x64xf32>
    %11 = vector.broadcast %9 : vector<1x64xf32> to vector<128x64xf32>
    %12 = arith.addf %10, %11 : vector<128x64xf32>
    %13 = math.tanh %12 : vector<128x64xf32>
    %14 = arith.truncf %13 : vector<128x64xf32> to vector<128x64xbf16>
    %c0_10 = arith.constant 0 : index
    %c0_11 = arith.constant 0 : index
    %15 = vector.load %arg6[%c0_10, %c0_11] : memref<64x64xbf16, #tpu.memory_space<vmem>>, vector<64x64xbf16>
    %c0_12 = arith.constant 0 : index
    %c0_13 = arith.constant 0 : index
    %16 = vector.load %arg7[%c0_12, %c0_13] : memref<1x64xf32, #tpu.memory_space<vmem>>, vector<1x64xf32>
    %cst_14 = arith.constant dense<0.000000e+00> : vector<128x64xf32>
    %17 = tpu.matmul %14, %15, %cst_14 {dimension_numbers = #tpu.dot_dimension_numbers<[1], [0], [0], [1], [0, 0, 1, 1], [], []>} : vector<128x64xbf16>, vector<64x64xbf16>, vector<128x64xf32> -> vector<128x64xf32>
    %18 = vector.broadcast %16 : vector<1x64xf32> to vector<128x64xf32>
    %19 = arith.addf %17, %18 : vector<128x64xf32>
    %20 = math.tanh %19 : vector<128x64xf32>
    %21 = arith.truncf %20 : vector<128x64xf32> to vector<128x64xbf16>
    %c0_15 = arith.constant 0 : index
    %c0_16 = arith.constant 0 : index
    %22 = vector.load %arg8[%c0_15, %c0_16] : memref<64x64xbf16, #tpu.memory_space<vmem>>, vector<64x64xbf16>
    %c0_17 = arith.constant 0 : index
    %c0_18 = arith.constant 0 : index
    %23 = vector.load %arg9[%c0_17, %c0_18] : memref<1x64xf32, #tpu.memory_space<vmem>>, vector<1x64xf32>
    %cst_19 = arith.constant dense<0.000000e+00> : vector<128x64xf32>
    %24 = tpu.matmul %21, %22, %cst_19 {dimension_numbers = #tpu.dot_dimension_numbers<[1], [0], [0], [1], [0, 0, 1, 1], [], []>} : vector<128x64xbf16>, vector<64x64xbf16>, vector<128x64xf32> -> vector<128x64xf32>
    %25 = vector.broadcast %23 : vector<1x64xf32> to vector<128x64xf32>
    %26 = arith.addf %24, %25 : vector<128x64xf32>
    %27 = math.tanh %26 : vector<128x64xf32>
    %28 = arith.truncf %27 : vector<128x64xf32> to vector<128x64xbf16>
    %c0_20 = arith.constant 0 : index
    %c0_21 = arith.constant 0 : index
    %29 = vector.load %arg10[%c0_20, %c0_21] : memref<64x16xbf16, #tpu.memory_space<vmem>>, vector<64x16xbf16>
    %c0_22 = arith.constant 0 : index
    %c0_23 = arith.constant 0 : index
    %30 = vector.load %arg11[%c0_22, %c0_23] : memref<1x16xf32, #tpu.memory_space<vmem>>, vector<1x16xf32>
    %cst_24 = arith.constant dense<0.000000e+00> : vector<128x16xf32>
    %31 = tpu.matmul %28, %29, %cst_24 {dimension_numbers = #tpu.dot_dimension_numbers<[1], [0], [0], [1], [0, 0, 1, 1], [], []>} : vector<128x64xbf16>, vector<64x16xbf16>, vector<128x16xf32> -> vector<128x16xf32>
    %32 = vector.broadcast %30 : vector<1x16xf32> to vector<128x16xf32>
    %33 = arith.addf %31, %32 : vector<128x16xf32>
    %c0_25 = arith.constant 0 : index
    %c0_26 = arith.constant 0 : index
    %34 = vector.load %arg12[%c0_25, %c0_26] : memref<128x16xf32, #tpu.memory_space<vmem>>, vector<128x16xf32>
    tpu.vector_store %arg12[%c0_25, %c0_26], %33 {strides = array<i32>} : memref<128x16xf32, #tpu.memory_space<vmem>>, vector<128x16xf32>,
    return
  }
  func.func @transform_0(%arg0: i32) -> (i32, i32) {
    %c0_i32 = arith.constant 0 : i32
    %c0_i32_0 = arith.constant 0 : i32
    return %arg0, %c0_i32 : i32, i32
  }
  func.func @transform_1(%arg0: i32) -> (i32, i32) {
    %c0_i32 = arith.constant 0 : i32
    %c0_i32_0 = arith.constant 0 : i32
    %c0_i32_1 = arith.constant 0 : i32
    return %c0_i32, %c0_i32_0 : i32, i32
  }
  func.func @transform_2(%arg0: i32) -> (i32, i32) {
    %c0_i32 = arith.constant 0 : i32
    %c0_i32_0 = arith.constant 0 : i32
    %c0_i32_1 = arith.constant 0 : i32
    return %c0_i32, %c0_i32_0 : i32, i32
  }
  func.func @transform_3(%arg0: i32) -> (i32, i32) {
    %c0_i32 = arith.constant 0 : i32
    %c0_i32_0 = arith.constant 0 : i32
    %c0_i32_1 = arith.constant 0 : i32
    return %c0_i32, %c0_i32_0 : i32, i32
  }
  func.func @transform_4(%arg0: i32) -> (i32, i32) {
    %c0_i32 = arith.constant 0 : i32
    %c0_i32_0 = arith.constant 0 : i32
    %c0_i32_1 = arith.constant 0 : i32
    return %c0_i32, %c0_i32_0 : i32, i32
  }
  func.func @transform_5(%arg0: i32) -> (i32, i32) {
    %c0_i32 = arith.constant 0 : i32
    %c0_i32_0 = arith.constant 0 : i32
    %c0_i32_1 = arith.constant 0 : i32
    return %c0_i32, %c0_i32_0 : i32, i32
  }
  func.func @transform_6(%arg0: i32) -> (i32, i32) {
    %c0_i32 = arith.constant 0 : i32
    %c0_i32_0 = arith.constant 0 : i32
    %c0_i32_1 = arith.constant 0 : i32
    return %c0_i32, %c0_i32_0 : i32, i32
  }
  func.func @transform_7(%arg0: i32) -> (i32, i32) {
    %c0_i32 = arith.constant 0 : i32
    %c0_i32_0 = arith.constant 0 : i32
    %c0_i32_1 = arith.constant 0 : i32
    return %c0_i32, %c0_i32_0 : i32, i32
  }
  func.func @transform_8(%arg0: i32) -> (i32, i32) {
    %c0_i32 = arith.constant 0 : i32
    %c0_i32_0 = arith.constant 0 : i32
    %c0_i32_1 = arith.constant 0 : i32
    return %c0_i32, %c0_i32_0 : i32, i32
  }
  func.func @transform_9(%arg0: i32) -> (i32, i32) {
    %c0_i32 = arith.constant 0 : i32
    %c0_i32_0 = arith.constant 0 : i32
    %c0_i32_1 = arith.constant 0 : i32
    return %c0_i32, %c0_i32_0 : i32, i32
  }
  func.func @transform_10(%arg0: i32) -> (i32, i32) {
    %c0_i32 = arith.constant 0 : i32
    %c0_i32_0 = arith.constant 0 : i32
    %c0_i32_1 = arith.constant 0 : i32
    return %c0_i32, %c0_i32_0 : i32, i32
  }
  func.func @transform_11(%arg0: i32) -> (i32, i32) {
    %c0_i32 = arith.constant 0 : i32
    %c0_i32_0 = arith.constant 0 : i32
    return %arg0, %c0_i32 : i32, i32
  }
}

</mosaic_0001>

<llo_original>
// kernel: net5_forward.1
$region0: #{net5_forward.1}
  #allocation0 [shape = 'u32[]', space=smem, size = 0x4, offset = 0x4, fixed_abs, tag = 'smem constant byte address 0x4 - core index']
  #allocation1 [shape = 'u32[72,128]{1,0:T(1,128)}', space=vmem, size = 0x9000, scoped, tag = 'internal scratch']
  %s0 = inlined_call_operand.vmem [shape: bf16[256,32], index: 0, kind: input, shape index: {}]
  %s1 = inlined_call_operand.vmem [shape: bf16[32,64], index: 1, kind: input, shape index: {}]
  %s2 = inlined_call_operand.vmem [shape: f32[1,64], index: 2, kind: input, shape index: {}]
  %s3 = inlined_call_operand.vmem [shape: bf16[64,64], index: 3, kind: input, shape index: {}]
  %s4 = inlined_call_operand.vmem [shape: f32[1,64], index: 4, kind: input, shape index: {}]
  %s5 = inlined_call_operand.vmem [shape: bf16[64,64], index: 5, kind: input, shape index: {}]
  %s6 = inlined_call_operand.vmem [shape: f32[1,64], index: 6, kind: input, shape index: {}]
  %s7 = inlined_call_operand.vmem [shape: bf16[64,64], index: 7, kind: input, shape index: {}]
  %s8 = inlined_call_operand.vmem [shape: f32[1,64], index: 8, kind: input, shape index: {}]
  %s9 = inlined_call_operand.vmem [shape: bf16[64,16], index: 9, kind: input, shape index: {}]
  %s10 = inlined_call_operand.vmem [shape: f32[1,16], index: 10, kind: input, shape index: {}]
  %s11 = inlined_call_operand.vmem [shape: f32[256,16], index: 11, kind: output, shape index: {}]
  %s12 = sld [smem:[#allocation0]]
  $region77: #{net5_forward.1} parent=0
    _
  %s14 = ssub.s32 1, %s12
  %s15 = scalar_select 0, %s14, %s12
  loop: start=0, step=1, limit=4
  $region2: #{net5_forward.1} parent=0 // loop_pre_header
    _
  $region3: #{net5_forward.1} parent=0 // loop_header
    %s17 = sphi 0, %s21
    %p18 = scmp.ge.s32.totalorder %s17, 4
    %s27 = sphi 0, %s29
    %s30 = sphi 0, %s27
    %s31 = sphi 0, %s30
    %s47 = sphi 0, %s31
    %s51 = sphi 0, %s51
    %s53 = sphi 0, %s51
    %s54 = sphi 0, %s53
    %s68 = sphi 0, %s54
    %s72 = sphi 0, %s72
    %s74 = sphi 0, %s72
    %s75 = sphi 0, %s74
    %s89 = sphi 0, %s75
    %s93 = sphi 0, %s93
    %s95 = sphi 0, %s93
    %s96 = sphi 0, %s95
    %s110 = sphi 0, %s96
    %s114 = sphi 0, %s114
    %s116 = sphi 0, %s114
    %s117 = sphi 0, %s116
    %s131 = sphi 0, %s117
    %s135 = sphi 0, %s135
    %s137 = sphi 0, %s135
    %s138 = sphi 0, %s137
    %s152 = sphi 0, %s138
    %s156 = sphi 0, %s156
    %s158 = sphi 0, %s156
    %s159 = sphi 0, %s158
    %s173 = sphi 0, %s159
    %s177 = sphi 0, %s177
    %s179 = sphi 0, %s177
    %s180 = sphi 0, %s179
    %s194 = sphi 0, %s180
    %s198 = sphi 0, %s198
    %s200 = sphi 0, %s198
    %s201 = sphi 0, %s200
    %s215 = sphi 0, %s201
    %s219 = sphi 0, %s219
    %s221 = sphi 0, %s219
    %s222 = sphi 0, %s221
    %s236 = sphi 0, %s222
    %s240 = sphi 0, %s240
    %s242 = sphi 0, %s240
    %s243 = sphi 0, %s242
    %s257 = sphi 0, %s243
    %s263 = sphi 0, %s265
    %s266 = sphi 0, %s263
    %s267 = sphi 0, %s266
    %s283 = sphi 0, %s267
  $region4: #{net5_forward.1} parent=0 // loop_header_branch
    %20 = sbr.rel (%p18) target = $region8
  $region5: #{net5_forward.1} parent=0 // loop_body
    %s22 = ssub.s32 %s17, 1
    %s23 = ssub.s32 %s17, 2
    %s24 = sadd.s32 %s17, 1
    %s25 = ssub.s32 %s17, %s24
    %p26 = scmp.eq.s32.totalorder %s25, 0
    %s28 = sadd.s32 %s27, 1
    %s29 = scalar_select %p26, %s27, %s28
    %p32 = pneg %p26
    %p33 = scmp.eq.s32.totalorder %s17, 1
    %p34 = por %p32, %p33
    %p35 = scmp.ne.s32.totalorder %s27, %s30
    %p36 = scmp.eq.s32.totalorder %s17, 0
    %p37 = por %p35, %p36
    %p38 = scmp.ne.s32.totalorder %s27, %s30
    %p39 = scmp.eq.s32.totalorder %s22, 1
    %p40 = por %p38, %p39
    %p41 = scmp.ne.s32.totalorder %s30, %s31
    %p42 = scmp.eq.s32.totalorder %s22, 0
    %p43 = por %p41, %p42
    %p44 = scmp.ne.s32.totalorder %s30, %s31
    %p45 = scmp.eq.s32.totalorder %s23, 1
    %p46 = por %p44, %p45
    %p48 = scmp.ne.s32.totalorder %s31, %s47
    %p49 = scmp.eq.s32.totalorder %s23, 0
    %p50 = por %p48, %p49
    %s52 = sadd.s32 %s51, 1
    %p55 = scmp.eq.s32.totalorder %s17, 1
    %p56 = scmp.ne.s32.totalorder %s51, %s53
    %p57 = scmp.eq.s32.totalorder %s17, 0
    %p58 = por %p56, %p57
    %p59 = scmp.ne.s32.totalorder %s51, %s53
    %p60 = scmp.eq.s32.totalorder %s22, 1
    %p61 = por %p59, %p60
    %p62 = scmp.ne.s32.totalorder %s53, %s54
    %p63 = scmp.eq.s32.totalorder %s22, 0
    %p64 = por %p62, %p63
    %p65 = scmp.ne.s32.totalorder %s53, %s54
    %p66 = scmp.eq.s32.totalorder %s23, 1
    %p67 = por %p65, %p66
    %p69 = scmp.ne.s32.totalorder %s54, %s68
    %p70 = scmp.eq.s32.totalorder %s23, 0
    %p71 = por %p69, %p70
    %s73 = sadd.s32 %s72, 1
    %p76 = scmp.eq.s32.totalorder %s17, 1
    %p77 = scmp.ne.s32.totalorder %s72, %s74
    %p78 = scmp.eq.s32.totalorder %s17, 0
    %p79 = por %p77, %p78
    %p80 = scmp.ne.s32.totalorder %s72, %s74
    %p81 = scmp.eq.s32.totalorder %s22, 1
    %p82 = por %p80, %p81
    %p83 = scmp.ne.s32.totalorder %s74, %s75
    %p84 = scmp.eq.s32.totalorder %s22, 0
    %p85 = por %p83, %p84
    %p86 = scmp.ne.s32.totalorder %s74, %s75
    %p87 = scmp.eq.s32.totalorder %s23, 1
    %p88 = por %p86, %p87
    %p90 = scmp.ne.s32.totalorder %s75, %s89
    %p91 = scmp.eq.s32.totalorder %s23, 0
    %p92 = por %p90, %p91
    %s94 = sadd.s32 %s93, 1
    %p97 = scmp.eq.s32.totalorder %s17, 1
    %p98 = scmp.ne.s32.totalorder %s93, %s95
    %p99 = scmp.eq.s32.totalorder %s17, 0
    %p100 = por %p98, %p99
    %p101 = scmp.ne.s32.totalorder %s93, %s95
    %p102 = scmp.eq.s32.totalorder %s22, 1
    %p103 = por %p101, %p102
    %p104 = scmp.ne.s32.totalorder %s95, %s96
    %p105 = scmp.eq.s32.totalorder %s22, 0
    %p106 = por %p104, %p105
    %p107 = scmp.ne.s32.totalorder %s95, %s96
    %p108 = scmp.eq.s32.totalorder %s23, 1
    %p109 = por %p107, %p108
    %p111 = scmp.ne.s32.totalorder %s96, %s110
    %p112 = scmp.eq.s32.totalorder %s23, 0
    %p113 = por %p111, %p112
    %s115 = sadd.s32 %s114, 1
    %p118 = scmp.eq.s32.totalorder %s17, 1
    %p119 = scmp.ne.s32.totalorder %s114, %s116
    %p120 = scmp.eq.s32.totalorder %s17, 0
    %p121 = por %p119, %p120
    %p122 = scmp.ne.s32.totalorder %s114, %s116
    %p123 = scmp.eq.s32.totalorder %s22, 1
    %p124 = por %p122, %p123
    %p125 = scmp.ne.s32.totalorder %s116, %s117
    %p126 = scmp.eq.s32.totalorder %s22, 0
    %p127 = por %p125, %p126
    %p128 = scmp.ne.s32.totalorder %s116, %s117
    %p129 = scmp.eq.s32.totalorder %s23, 1
    %p130 = por %p128, %p129
    %p132 = scmp.ne.s32.totalorder %s117, %s131
    %p133 = scmp.eq.s32.totalorder %s23, 0
    %p134 = por %p132, %p133
    %s136 = sadd.s32 %s135, 1
    %p139 = scmp.eq.s32.totalorder %s17, 1
    %p140 = scmp.ne.s32.totalorder %s135, %s137
    %p141 = scmp.eq.s32.totalorder %s17, 0
    %p142 = por %p140, %p141
    %p143 = scmp.ne.s32.totalorder %s135, %s137
    %p144 = scmp.eq.s32.totalorder %s22, 1
    %p145 = por %p143, %p144
    %p146 = scmp.ne.s32.totalorder %s137, %s138
    %p147 = scmp.eq.s32.totalorder %s22, 0
    %p148 = por %p146, %p147
    %p149 = scmp.ne.s32.totalorder %s137, %s138
    %p150 = scmp.eq.s32.totalorder %s23, 1
    %p151 = por %p149, %p150
    %p153 = scmp.ne.s32.totalorder %s138, %s152
    %p154 = scmp.eq.s32.totalorder %s23, 0
    %p155 = por %p153, %p154
    %s157 = sadd.s32 %s156, 1
    %p160 = scmp.eq.s32.totalorder %s17, 1
    %p161 = scmp.ne.s32.totalorder %s156, %s158
    %p162 = scmp.eq.s32.totalorder %s17, 0
    %p163 = por %p161, %p162
    %p164 = scmp.ne.s32.totalorder %s156, %s158
    %p165 = scmp.eq.s32.totalorder %s22, 1
    %p166 = por %p164, %p165
    %p167 = scmp.ne.s32.totalorder %s158, %s159
    %p168 = scmp.eq.s32.totalorder %s22, 0
    %p169 = por %p167, %p168
    %p170 = scmp.ne.s32.totalorder %s158, %s159
    %p171 = scmp.eq.s32.totalorder %s23, 1
    %p172 = por %p170, %p171
    %p174 = scmp.ne.s32.totalorder %s159, %s173
    %p175 = scmp.eq.s32.totalorder %s23, 0
    %p176 = por %p174, %p175
    %s178 = sadd.s32 %s177, 1
    %p181 = scmp.eq.s32.totalorder %s17, 1
    %p182 = scmp.ne.s32.totalorder %s177, %s179
    %p183 = scmp.eq.s32.totalorder %s17, 0
    %p184 = por %p182, %p183
    %p185 = scmp.ne.s32.totalorder %s177, %s179
    %p186 = scmp.eq.s32.totalorder %s22, 1
    %p187 = por %p185, %p186
    %p188 = scmp.ne.s32.totalorder %s179, %s180
    %p189 = scmp.eq.s32.totalorder %s22, 0
    %p190 = por %p188, %p189
    %p191 = scmp.ne.s32.totalorder %s179, %s180
    %p192 = scmp.eq.s32.totalorder %s23, 1
    %p193 = por %p191, %p192
    %p195 = scmp.ne.s32.totalorder %s180, %s194
    %p196 = scmp.eq.s32.totalorder %s23, 0
    %p197 = por %p195, %p196
    %s199 = sadd.s32 %s198, 1
    %p202 = scmp.eq.s32.totalorder %s17, 1
    %p203 = scmp.ne.s32.totalorder %s198, %s200
    %p204 = scmp.eq.s32.totalorder %s17, 0
    %p205 = por %p203, %p204
    %p206 = scmp.ne.s32.totalorder %s198, %s200
    %p207 = scmp.eq.s32.totalorder %s22, 1
    %p208 = por %p206, %p207
    %p209 = scmp.ne.s32.totalorder %s200, %s201
    %p210 = scmp.eq.s32.totalorder %s22, 0
    %p211 = por %p209, %p210
    %p212 = scmp.ne.s32.totalorder %s200, %s201
    %p213 = scmp.eq.s32.totalorder %s23, 1
    %p214 = por %p212, %p213
    %p216 = scmp.ne.s32.totalorder %s201, %s215
    %p217 = scmp.eq.s32.totalorder %s23, 0
    %p218 = por %p216, %p217
    %s220 = sadd.s32 %s219, 1
    %p223 = scmp.eq.s32.totalorder %s17, 1
    %p224 = scmp.ne.s32.totalorder %s219, %s221
    %p225 = scmp.eq.s32.totalorder %s17, 0
    %p226 = por %p224, %p225
    %p227 = scmp.ne.s32.totalorder %s219, %s221
    %p228 = scmp.eq.s32.totalorder %s22, 1
    %p229 = por %p227, %p228
    %p230 = scmp.ne.s32.totalorder %s221, %s222
    %p231 = scmp.eq.s32.totalorder %s22, 0
    %p232 = por %p230, %p231
    %p233 = scmp.ne.s32.totalorder %s221, %s222
    %p234 = scmp.eq.s32.totalorder %s23, 1
    %p235 = por %p233, %p234
    %p237 = scmp.ne.s32.totalorder %s222, %s236
    %p238 = scmp.eq.s32.totalorder %s23, 0
    %p239 = por %p237, %p238
    %s241 = sadd.s32 %s240, 1
    %p244 = scmp.eq.s32.totalorder %s17, 1
    %p245 = scmp.ne.s32.totalorder %s240, %s242
    %p246 = scmp.eq.s32.totalorder %s17, 0
    %p247 = por %p245, %p246
    %p248 = scmp.ne.s32.totalorder %s240, %s242
    %p249 = scmp.eq.s32.totalorder %s22, 1
    %p250 = por %p248, %p249
    %p251 = scmp.ne.s32.totalorder %s242, %s243
    %p252 = scmp.eq.s32.totalorder %s22, 0
    %p253 = por %p251, %p252
    %p254 = scmp.ne.s32.totalorder %s242, %s243
    %p255 = scmp.eq.s32.totalorder %s23, 1
    %p256 = por %p254, %p255
    %p258 = scmp.ne.s32.totalorder %s243, %s257
    %p259 = scmp.eq.s32.totalorder %s23, 0
    %p260 = por %p258, %p259
    %s261 = ssub.s32 %s17, %s24
    %p262 = scmp.eq.s32.totalorder %s261, 0
    %s264 = sadd.s32 %s263, 1
    %s265 = scalar_select %p262, %s263, %s264
    %p268 = pneg %p262
    %p269 = scmp.eq.s32.totalorder %s17, 1
    %p270 = por %p268, %p269
    %p271 = scmp.ne.s32.totalorder %s263, %s266
    %p272 = scmp.eq.s32.totalorder %s17, 0
    %p273 = por %p271, %p272
    %p274 = scmp.ne.s32.totalorder %s263, %s266
    %p275 = scmp.eq.s32.totalorder %s22, 1
    %p276 = por %p274, %p275
    %p277 = scmp.ne.s32.totalorder %s266, %s267
    %p278 = scmp.eq.s32.totalorder %s22, 0
    %p279 = por %p277, %p278
    %p280 = scmp.ne.s32.totalorder %s266, %s267
    %p281 = scmp.eq.s32.totalorder %s23, 1
    %p282 = por %p280, %p281
    %p284 = scmp.ne.s32.totalorder %s267, %s283
    %p285 = scmp.eq.s32.totalorder %s23, 0
    %p286 = por %p284, %p285
    %p287 = scmp.le.s32.totalorder 1, %s17
    %p288 = scmp.lt.s32.totalorder %s17, 3
    %p289 = pnand %p287, %p288
    %p290 = pneg %p289
    // Predicated region
    $region9: #{net5_forward.1} parent=5 // pred_check
      _
    $region10: #{net5_forward.1} parent=5 // pred_check_branch
      %292 = sbr.rel (%p289) target = $region12
    $region11: #{net5_forward.1} parent=5 // pred_region
      %s293 = ssub.s32 %s17, 1
      // Predicated region
      $region13: #{net5_forward.1} parent=11 // pred_check
        %p294 = pneg %p64
      $region14: #{net5_forward.1} parent=11 // pred_check_branch
        %296 = sbr.rel (%p294) target = $region16
      $region15: #{net5_forward.1} parent=11 // pred_region
        _
      $region16: #{net5_forward.1} parent=11 // pred_fallthru
        _
      // Predicated region
      $region17: #{net5_forward.1} parent=11 // pred_check
        %p297 = pneg %p85
      $region18: #{net5_forward.1} parent=11 // pred_check_branch
        %299 = sbr.rel (%p297) target = $region20
      $region19: #{net5_forward.1} parent=11 // pred_region
        _
      $region20: #{net5_forward.1} parent=11 // pred_fallthru
        _
      // Predicated region
      $region21: #{net5_forward.1} parent=11 // pred_check
        %p300 = pneg %p106
      $region22: #{net5_forward.1} parent=11 // pred_check_branch
        %302 = sbr.rel (%p300) target = $region24
      $region23: #{net5_forward.1} parent=11 // pred_region
        _
      $region24: #{net5_forward.1} parent=11 // pred_fallthru
        _
      // Predicated region
      $region25: #{net5_forward.1} parent=11 // pred_check
        %p303 = pneg %p127
      $region26: #{net5_forward.1} parent=11 // pred_check_branch
        %305 = sbr.rel (%p303) target = $region28
      $region27: #{net5_forward.1} parent=11 // pred_region
        _
      $region28: #{net5_forward.1} parent=11 // pred_fallthru
        _
      // Predicated region
      $region29: #{net5_forward.1} parent=11 // pred_check
        %p306 = pneg %p148
      $region30: #{net5_forward.1} parent=11 // pred_check_branch
        %308 = sbr.rel (%p306) target = $region32
      $region31: #{net5_forward.1} parent=11 // pred_region
        _
      $region32: #{net5_forward.1} parent=11 // pred_fallthru
        _
      // Predicated region
      $region33: #{net5_forward.1} parent=11 // pred_check
        %p309 = pneg %p169
      $region34: #{net5_forward.1} parent=11 // pred_check_branch
        %311 = sbr.rel (%p309) target = $region36
      $region35: #{net5_forward.1} parent=11 // pred_region
        _
      $region36: #{net5_forward.1} parent=11 // pred_fallthru
        _
      // Predicated region
      $region37: #{net5_forward.1} parent=11 // pred_check
        %p312 = pneg %p190
      $region38: #{net5_forward.1} parent=11 // pred_check_branch
        %314 = sbr.rel (%p312) target = $region40
      $region39: #{net5_forward.1} parent=11 // pred_region
        _
      $region40: #{net5_forward.1} parent=11 // pred_fallthru
        _
      // Predicated region
      $region41: #{net5_forward.1} parent=11 // pred_check
        %p315 = pneg %p211
      $region42: #{net5_forward.1} parent=11 // pred_check_branch
        %317 = sbr.rel (%p315) target = $region44
      $region43: #{net5_forward.1} parent=11 // pred_region
        _
      $region44: #{net5_forward.1} parent=11 // pred_fallthru
        _
      // Predicated region
      $region45: #{net5_forward.1} parent=11 // pred_check
        %p318 = pneg %p232
      $region46: #{net5_forward.1} parent=11 // pred_check_branch
        %320 = sbr.rel (%p318) target = $region48
      $region47: #{net5_forward.1} parent=11 // pred_region
        _
      $region48: #{net5_forward.1} parent=11 // pred_fallthru
        _
      // Predicated region
      $region49: #{net5_forward.1} parent=11 // pred_check
        %p321 = pneg %p253
      $region50: #{net5_forward.1} parent=11 // pred_check_branch
        %323 = sbr.rel (%p321) target = $region52
      $region51: #{net5_forward.1} parent=11 // pred_region
        _
      $region52: #{net5_forward.1} parent=11 // pred_fallthru
        _
    $region12: #{net5_forward.1} parent=5 // pred_fallthru
      _
    %p324 = scmp.lt.s32.totalorder %s17, 2
    // Predicated region
    $region53: #{net5_forward.1} parent=5 // pred_check
      %p325 = pneg %p324
    $region54: #{net5_forward.1} parent=5 // pred_check_branch
      %327 = sbr.rel (%p325) target = $region56
    $region55: #{net5_forward.1} parent=5 // pred_region
      // Predicated region
      $region57: #{net5_forward.1} parent=55 // pred_check
        %p328 = pneg %p37
      $region58: #{net5_forward.1} parent=55 // pred_check_branch
        %330 = sbr.rel (%p328) target = $region60
      $region59: #{net5_forward.1} parent=55 // pred_region
        %s331 = smul.u32 16, %s17
        %p332 = scmp.lt.s32.totalorder %s331, 31
        %s333 = scalar_select %p332, %s331, 31
        %s334 = smul.addr %s333, 4
        %s335 = scalar_lea.vmem %s0, %s334
        %s336 = smul.u32 16, %s17
      $region60: #{net5_forward.1} parent=55 // pred_fallthru
        _
    $region56: #{net5_forward.1} parent=5 // pred_fallthru
      _
    %p337 = scmp.le.s32.totalorder 1, %s17
    %p338 = scmp.lt.s32.totalorder %s17, 3
    %p339 = pnand %p337, %p338
    %p340 = pneg %p339
    // Predicated region
    $region61: #{net5_forward.1} parent=5 // pred_check
      _
    $region62: #{net5_forward.1} parent=5 // pred_check_branch
      %342 = sbr.rel (%p339) target = $region64
    $region63: #{net5_forward.1} parent=5 // pred_region
      %s343 = ssub.s32 %s17, 1
      %s344 = smul.u32 16, %s22
      %p345 = scmp.lt.s32.totalorder %s344, 31
      %s346 = scalar_select %p345, %s344, 31
      %s347 = smul.addr %s346, 4
      %s348 = scalar_lea.vmem %s0, %s347
      %p349 = pneg %p43
      %p350 = pneg %p40
      %p351 = pneg %p64
      %p352 = pneg %p61
      %p353 = pneg %p85
      %p354 = pneg %p82
      %p355 = pneg %p106
      %p356 = pneg %p103
      %p357 = pneg %p127
      %p358 = pneg %p124
      %p359 = pneg %p148
      %p360 = pneg %p145
      %p361 = pneg %p169
      %p362 = pneg %p166
      %p363 = pneg %p190
      %p364 = pneg %p187
      %p365 = pneg %p211
      %p366 = pneg %p208
      %p367 = pneg %p232
      %p368 = pneg %p229
      %p369 = pneg %p253
      %p370 = pneg %p250
      %p371 = pneg %p279
      %p372 = pneg %p276
      %s373 = smul.u32 16, %s22
      %p374 = scmp.lt.s32.totalorder %s373, 31
      %s375 = scalar_select %p374, %s373, 31
      %s376 = smul.addr %s375, 8
      %s377 = scalar_lea.vmem %s11, %s376
      %s378 = smul.u32 16, %s22
      %p379 = scmp.lt.s32.totalorder %s378, 31
      %s380 = scalar_select %p379, %s378, 31
      %s381 = smul.addr %s380, 4
      %s382 = scalar_lea.vmem %s0, %s381
      %s383 = smul.u32 16, %s22
      %s384 = smul.u32 16, %s22
      %p385 = scmp.lt.s32.totalorder %s384, 31
      %s386 = scalar_select %p385, %s384, 31
      %s387 = smul.addr %s386, 8
      %s388 = scalar_lea.vmem %s11, %s387
      %s389 = smul.u32 16, %s22
      %v391 = vld [vmem:[%s382] sm:$0xf]
      %v392 = vld [vmem:[%s382 + $0x4] sm:$0xf]
      %v393 = vld [vmem:[%s382 + $0x8] sm:$0xf]
      %v394 = vld [vmem:[%s382 + $0xc] sm:$0xf]
      %v395 = vld [vmem:[%s382 + $0x10] sm:$0xf]
      %v396 = vld [vmem:[%s382 + $0x14] sm:$0xf]
      %v397 = vld [vmem:[%s382 + $0x18] sm:$0xf]
      %v398 = vld [vmem:[%s382 + $0x1c] sm:$0xf]
      %v399 = vld [vmem:[%s382 + $0x20] sm:$0xf]
      %v400 = vld [vmem:[%s382 + $0x24] sm:$0xf]
      %v401 = vld [vmem:[%s382 + $0x28] sm:$0xf]
      %v402 = vld [vmem:[%s382 + $0x2c] sm:$0xf]
      %v403 = vld [vmem:[%s382 + $0x30] sm:$0xf]
      %v404 = vld [vmem:[%s382 + $0x34] sm:$0xf]
      %v405 = vld [vmem:[%s382 + $0x38] sm:$0xf]
      %v406 = vld [vmem:[%s382 + $0x3c] sm:$0xf]
      %v407 = vld [vmem:[%s1] sm:$0xf]
      %v408 = vld [vmem:[%s1 + $0x4] sm:$0xf]
      %v409 = vld [vmem:[%s1 + $0x8] sm:$0xf]
      %v410 = vld [vmem:[%s1 + $0xc] sm:$0xf]
      %v411 = vld [vmem:[%s2] sm:$0x1]
      %v413 = vperm.slane %v411, 0
      %v431 = vunpack.c.l.b16 %v391
      %v432 = vunpack.c.l.b16 %v392
      %v433 = vunpack.c.l.b16 %v393
      %v434 = vunpack.c.l.b16 %v394
      %v435 = vunpack.c.l.b16 %v395
      %v436 = vunpack.c.l.b16 %v396
      %v437 = vunpack.c.l.b16 %v397
      %v438 = vunpack.c.l.b16 %v398
      %v439 = vunpack.c.l.b16 %v399
      %v440 = vunpack.c.l.b16 %v400
      %v441 = vunpack.c.l.b16 %v401
      %v442 = vunpack.c.l.b16 %v402
      %v443 = vunpack.c.l.b16 %v403
      %v444 = vunpack.c.l.b16 %v404
      %v445 = vunpack.c.l.b16 %v405
      %v446 = vunpack.c.l.b16 %v406
      %v447 = vpack.c.b16 %v432, %v431
      %v448 = vpack.c.b16 %v434, %v433
      %v449 = vpack.c.b16 %v436, %v435
      %v450 = vpack.c.b16 %v438, %v437
      %v451 = vpack.c.b16 %v440, %v439
      %v452 = vpack.c.b16 %v442, %v441
      %v453 = vpack.c.b16 %v444, %v443
      %v454 = vpack.c.b16 %v446, %v445
      %v459 = vunpack.c.l.b16 %v407
      %v460 = vunpack.c.l.b16 %v408
      %v461 = vunpack.c.l.b16 %v409
      %v462 = vunpack.c.l.b16 %v410
      %v463 = vpack.c.b16 %v460, %v459
      %v464 = vpack.c.b16 %v462, %v461
      %vm467 = vcmask 261120
      %v469 = vsel %vm467, %v447, 0
      %v472 = vsel %vm467, %v448, 0
      %v475 = vsel %vm467, %v449, 0
      %v478 = vsel %vm467, %v450, 0
      %v481 = vsel %vm467, %v451, 0
      %v484 = vsel %vm467, %v452, 0
      %v487 = vsel %vm467, %v453, 0
      %v490 = vsel %vm467, %v454, 0
      %492 = vmatpush.bf16.msra.mxu0 0
      %493 = vmatpush.bf16.msra.mxu0 0
      %494 = vmatpush.bf16.msra.mxu0 0
      %495 = vmatpush.bf16.msra.mxu0 0
      %496 = vmatpush.bf16.msra.mxu0 0
      %497 = vmatpush.bf16.msra.mxu0 0
      %498 = vmatpush.bf16.msra.mxu0 %v464
      %499 = vmatpush.bf16.msra.mxu0 %v463
      %500 = vmatmul.bf16.gmra.mxu0 %v469
      %v501 = vpop.f32.mrf.mxu0
      %v502 = vadd.f32 %v413, %v501
      %v503 = vpop.f32.mrf.mxu0
      %v504 = vadd.f32 %v413, %v503
      %505 = vmatmul.bf16.gmra.mxu0 %v472
      %v506 = vpop.f32.mrf.mxu0
      %v507 = vadd.f32 %v413, %v506
      %v508 = vpop.f32.mrf.mxu0
      %v509 = vadd.f32 %v413, %v508
      %510 = vmatmul.bf16.gmra.mxu0 %v475
      %v511 = vpop.f32.mrf.mxu0
      %v512 = vadd.f32 %v413, %v511
      %v513 = vpop.f32.mrf.mxu0
      %v514 = vadd.f32 %v413, %v513
      %515 = vmatmul.bf16.gmra.mxu0 %v478
      %v516 = vpop.f32.mrf.mxu0
      %v517 = vadd.f32 %v413, %v516
      %v518 = vpop.f32.mrf.mxu0
      %v519 = vadd.f32 %v413, %v518
      %520 = vmatmul.bf16.gmra.mxu0 %v481
      %v521 = vpop.f32.mrf.mxu0
      %v522 = vadd.f32 %v413, %v521
      %v523 = vpop.f32.mrf.mxu0
      %v524 = vadd.f32 %v413, %v523
      %525 = vmatmul.bf16.gmra.mxu0 %v484
      %v526 = vpop.f32.mrf.mxu0
      %v527 = vadd.f32 %v413, %v526
      %v528 = vpop.f32.mrf.mxu0
      %v529 = vadd.f32 %v413, %v528
      %530 = vmatmul.bf16.gmra.mxu0 %v487
      %v531 = vpop.f32.mrf.mxu0
      %v532 = vadd.f32 %v413, %v531
      %v533 = vpop.f32.mrf.mxu0
      %v534 = vadd.f32 %v413, %v533
      %535 = vmatmul.bf16.gmra.mxu0 %v490
      %v536 = vpop.f32.mrf.mxu0
      %v537 = vadd.f32 %v413, %v536
      %v538 = vpop.f32.mrf.mxu0
      %v539 = vadd.f32 %v413, %v538
      %540 = vdwg.mxu0
      %v541 = vtanh.pop %v502
      %v542 = vtanh.pop %v504
      %v543 = vtanh.pop %v507
      %v544 = vtanh.pop %v509
      %v545 = vtanh.pop %v512
      %v546 = vtanh.pop %v514
      %v547 = vtanh.pop %v517
      %v548 = vtanh.pop %v519
      %v549 = vtanh.pop %v522
      %v550 = vtanh.pop %v524
      %v551 = vtanh.pop %v527
      %v552 = vtanh.pop %v529
      %v553 = vtanh.pop %v532
      %v554 = vtanh.pop %v534
      %v555 = vtanh.pop %v537
      %v556 = vtanh.pop %v539
      %v557 = vpack.c.bf16 %v542, %v541
      %v558 = vpack.c.bf16 %v544, %v543
      %v559 = vpack.c.bf16 %v546, %v545
      %v560 = vpack.c.bf16 %v548, %v547
      %v561 = vpack.c.bf16 %v550, %v549
      %v562 = vpack.c.bf16 %v552, %v551
      %v563 = vpack.c.bf16 %v554, %v553
      %v564 = vpack.c.bf16 %v556, %v555
      %v565 = vld [vmem:[%s3] sm:$0xf]
      %v566 = vld [vmem:[%s3 + $0x4] sm:$0xf]
      %v567 = vld [vmem:[%s3 + $0x8] sm:$0xf]
      %v568 = vld [vmem:[%s3 + $0xc] sm:$0xf]
      %v569 = vld [vmem:[%s3 + $0x10] sm:$0xf]
      %v570 = vld [vmem:[%s3 + $0x14] sm:$0xf]
      %v571 = vld [vmem:[%s3 + $0x18] sm:$0xf]
      %v572 = vld [vmem:[%s3 + $0x1c] sm:$0xf]
      %v573 = vld [vmem:[%s4] sm:$0x1]
      %v575 = vperm.slane %v573, 0
      %v585 = vunpack.c.l.b16 %v565
      %v586 = vunpack.c.l.b16 %v566
      %v587 = vunpack.c.l.b16 %v567
      %v588 = vunpack.c.l.b16 %v568
      %v589 = vunpack.c.l.b16 %v569
      %v590 = vunpack.c.l.b16 %v570
      %v591 = vunpack.c.l.b16 %v571
      %v592 = vunpack.c.l.b16 %v572
      %v593 = vpack.c.b16 %v586, %v585
      %v594 = vpack.c.b16 %v588, %v587
      %v595 = vpack.c.b16 %v590, %v589
      %v596 = vpack.c.b16 %v592, %v591
      %vm601 = vcmask 523264
      %v603 = vsel %vm601, %v557, 0
      %v606 = vsel %vm601, %v558, 0
      %v609 = vsel %vm601, %v559, 0
      %v612 = vsel %vm601, %v560, 0
      %v615 = vsel %vm601, %v561, 0
      %v618 = vsel %vm601, %v562, 0
      %v621 = vsel %vm601, %v563, 0
      %v624 = vsel %vm601, %v564, 0
      %626 = vmatpush.bf16.msra.mxu0 0
      %627 = vmatpush.bf16.msra.mxu0 0
      %628 = vmatpush.bf16.msra.mxu0 0
      %629 = vmatpush.bf16.msra.mxu0 0
      %630 = vmatpush.bf16.msra.mxu0 %v596
      %631 = vmatpush.bf16.msra.mxu0 %v595
      %632 = vmatpush.bf16.msra.mxu0 %v594
      %633 = vmatpush.bf16.msra.mxu0 %v593
      %634 = vmatmul.bf16.gmra.mxu0 %v603
      %v635 = vpop.f32.mrf.mxu0
      %v636 = vadd.f32 %v575, %v635
      %v637 = vpop.f32.mrf.mxu0
      %v638 = vadd.f32 %v575, %v637
      %639 = vmatmul.bf16.gmra.mxu0 %v606
      %v640 = vpop.f32.mrf.mxu0
      %v641 = vadd.f32 %v575, %v640
      %v642 = vpop.f32.mrf.mxu0
      %v643 = vadd.f32 %v575, %v642
      %644 = vmatmul.bf16.gmra.mxu0 %v609
      %v645 = vpop.f32.mrf.mxu0
      %v646 = vadd.f32 %v575, %v645
      %v647 = vpop.f32.mrf.mxu0
      %v648 = vadd.f32 %v575, %v647
      %649 = vmatmul.bf16.gmra.mxu0 %v612
      %v650 = vpop.f32.mrf.mxu0
      %v651 = vadd.f32 %v575, %v650
      %v652 = vpop.f32.mrf.mxu0
      %v653 = vadd.f32 %v575, %v652
      %654 = vmatmul.bf16.gmra.mxu0 %v615
      %v655 = vpop.f32.mrf.mxu0
      %v656 = vadd.f32 %v575, %v655
      %v657 = vpop.f32.mrf.mxu0
      %v658 = vadd.f32 %v575, %v657
      %659 = vmatmul.bf16.gmra.mxu0 %v618
      %v660 = vpop.f32.mrf.mxu0
      %v661 = vadd.f32 %v575, %v660
      %v662 = vpop.f32.mrf.mxu0
      %v663 = vadd.f32 %v575, %v662
      %664 = vmatmul.bf16.gmra.mxu0 %v621
      %v665 = vpop.f32.mrf.mxu0
      %v666 = vadd.f32 %v575, %v665
      %v667 = vpop.f32.mrf.mxu0
      %v668 = vadd.f32 %v575, %v667
      %669 = vmatmul.bf16.gmra.mxu0 %v624
      %v670 = vpop.f32.mrf.mxu0
      %v671 = vadd.f32 %v575, %v670
      %v672 = vpop.f32.mrf.mxu0
      %v673 = vadd.f32 %v575, %v672
      %674 = vdwg.mxu0
      %v675 = vtanh.pop %v636
      %v676 = vtanh.pop %v638
      %v677 = vtanh.pop %v641
      %v678 = vtanh.pop %v643
      %v679 = vtanh.pop %v646
      %v680 = vtanh.pop %v648
      %v681 = vtanh.pop %v651
      %v682 = vtanh.pop %v653
      %v683 = vtanh.pop %v656
      %v684 = vtanh.pop %v658
      %v685 = vtanh.pop %v661
      %v686 = vtanh.pop %v663
      %v687 = vtanh.pop %v666
      %v688 = vtanh.pop %v668
      %v689 = vtanh.pop %v671
      %v690 = vtanh.pop %v673
      %v691 = vpack.c.bf16 %v676, %v675
      %v692 = vpack.c.bf16 %v678, %v677
      %v693 = vpack.c.bf16 %v680, %v679
      %v694 = vpack.c.bf16 %v682, %v681
      %v695 = vpack.c.bf16 %v684, %v683
      %v696 = vpack.c.bf16 %v686, %v685
      %v697 = vpack.c.bf16 %v688, %v687
      %v698 = vpack.c.bf16 %v690, %v689
      %v699 = vld [vmem:[%s5] sm:$0xf]
      %v700 = vld [vmem:[%s5 + $0x4] sm:$0xf]
      %v701 = vld [vmem:[%s5 + $0x8] sm:$0xf]
      %v702 = vld [vmem:[%s5 + $0xc] sm:$0xf]
      %v703 = vld [vmem:[%s5 + $0x10] sm:$0xf]
      %v704 = vld [vmem:[%s5 + $0x14] sm:$0xf]
      %v705 = vld [vmem:[%s5 + $0x18] sm:$0xf]
      %v706 = vld [vmem:[%s5 + $0x1c] sm:$0xf]
      %v707 = vld [vmem:[%s6] sm:$0x1]
      %v709 = vperm.slane %v707, 0
      %v719 = vunpack.c.l.b16 %v699
      %v720 = vunpack.c.l.b16 %v700
      %v721 = vunpack.c.l.b16 %v701
      %v722 = vunpack.c.l.b16 %v702
      %v723 = vunpack.c.l.b16 %v703
      %v724 = vunpack.c.l.b16 %v704
      %v725 = vunpack.c.l.b16 %v705
      %v726 = vunpack.c.l.b16 %v706
      %v727 = vpack.c.b16 %v720, %v719
      %v728 = vpack.c.b16 %v722, %v721
      %v729 = vpack.c.b16 %v724, %v723
      %v730 = vpack.c.b16 %v726, %v725
      %v736 = vsel %vm601, %v691, 0
      %v739 = vsel %vm601, %v692, 0
      %v742 = vsel %vm601, %v693, 0
      %v745 = vsel %vm601, %v694, 0
      %v748 = vsel %vm601, %v695, 0
      %v751 = vsel %vm601, %v696, 0
      %v754 = vsel %vm601, %v697, 0
      %v757 = vsel %vm601, %v698, 0
      %759 = vmatpush.bf16.msra.mxu0 0
      %760 = vmatpush.bf16.msra.mxu0 0
      %761 = vmatpush.bf16.msra.mxu0 0
      %762 = vmatpush.bf16.msra.mxu0 0
      %763 = vmatpush.bf16.msra.mxu0 %v730
      %764 = vmatpush.bf16.msra.mxu0 %v729
      %765 = vmatpush.bf16.msra.mxu0 %v728
      %766 = vmatpush.bf16.msra.mxu0 %v727
      %767 = vmatmul.bf16.gmra.mxu0 %v736
      %v768 = vpop.f32.mrf.mxu0
      %v769 = vadd.f32 %v709, %v768
      %v770 = vpop.f32.mrf.mxu0
      %v771 = vadd.f32 %v709, %v770
      %772 = vmatmul.bf16.gmra.mxu0 %v739
      %v773 = vpop.f32.mrf.mxu0
      %v774 = vadd.f32 %v709, %v773
      %v775 = vpop.f32.mrf.mxu0
      %v776 = vadd.f32 %v709, %v775
      %777 = vmatmul.bf16.gmra.mxu0 %v742
      %v778 = vpop.f32.mrf.mxu0
      %v779 = vadd.f32 %v709, %v778
      %v780 = vpop.f32.mrf.mxu0
      %v781 = vadd.f32 %v709, %v780
      %782 = vmatmul.bf16.gmra.mxu0 %v745
      %v783 = vpop.f32.mrf.mxu0
      %v784 = vadd.f32 %v709, %v783
      %v785 = vpop.f32.mrf.mxu0
      %v786 = vadd.f32 %v709, %v785
      %787 = vmatmul.bf16.gmra.mxu0 %v748
      %v788 = vpop.f32.mrf.mxu0
      %v789 = vadd.f32 %v709, %v788
      %v790 = vpop.f32.mrf.mxu0
      %v791 = vadd.f32 %v709, %v790
      %792 = vmatmul.bf16.gmra.mxu0 %v751
      %v793 = vpop.f32.mrf.mxu0
      %v794 = vadd.f32 %v709, %v793
      %v795 = vpop.f32.mrf.mxu0
      %v796 = vadd.f32 %v709, %v795
      %797 = vmatmul.bf16.gmra.mxu0 %v754
      %v798 = vpop.f32.mrf.mxu0
      %v799 = vadd.f32 %v709, %v798
      %v800 = vpop.f32.mrf.mxu0
      %v801 = vadd.f32 %v709, %v800
      %802 = vmatmul.bf16.gmra.mxu0 %v757
      %v803 = vpop.f32.mrf.mxu0
      %v804 = vadd.f32 %v709, %v803
      %v805 = vpop.f32.mrf.mxu0
      %v806 = vadd.f32 %v709, %v805
      %807 = vdwg.mxu0
      %v808 = vtanh.pop %v769
      %v809 = vtanh.pop %v771
      %v810 = vtanh.pop %v774
      %v811 = vtanh.pop %v776
      %v812 = vtanh.pop %v779
      %v813 = vtanh.pop %v781
      %v814 = vtanh.pop %v784
      %v815 = vtanh.pop %v786
      %v816 = vtanh.pop %v789
      %v817 = vtanh.pop %v791
      %v818 = vtanh.pop %v794
      %v819 = vtanh.pop %v796
      %v820 = vtanh.pop %v799
      %v821 = vtanh.pop %v801
      %v822 = vtanh.pop %v804
      %v823 = vtanh.pop %v806
      %v824 = vpack.c.bf16 %v809, %v808
      %v825 = vpack.c.bf16 %v811, %v810
      %v826 = vpack.c.bf16 %v813, %v812
      %v827 = vpack.c.bf16 %v815, %v814
      %v828 = vpack.c.bf16 %v817, %v816
      %v829 = vpack.c.bf16 %v819, %v818
      %v830 = vpack.c.bf16 %v821, %v820
      %v831 = vpack.c.bf16 %v823, %v822
      %v832 = vld [vmem:[%s7] sm:$0xf]
      %v833 = vld [vmem:[%s7 + $0x4] sm:$0xf]
      %v834 = vld [vmem:[%s7 + $0x8] sm:$0xf]
      %v835 = vld [vmem:[%s7 + $0xc] sm:$0xf]
      %v836 = vld [vmem:[%s7 + $0x10] sm:$0xf]
      %v837 = vld [vmem:[%s7 + $0x14] sm:$0xf]
      %v838 = vld [vmem:[%s7 + $0x18] sm:$0xf]
      %v839 = vld [vmem:[%s7 + $0x1c] sm:$0xf]
      %v840 = vld [vmem:[%s8] sm:$0x1]
      %v842 = vperm.slane %v840, 0
      %v852 = vunpack.c.l.b16 %v832
      %v853 = vunpack.c.l.b16 %v833
      %v854 = vunpack.c.l.b16 %v834
      %v855 = vunpack.c.l.b16 %v835
      %v856 = vunpack.c.l.b16 %v836
      %v857 = vunpack.c.l.b16 %v837
      %v858 = vunpack.c.l.b16 %v838
      %v859 = vunpack.c.l.b16 %v839
      %v860 = vpack.c.b16 %v853, %v852
      %v861 = vpack.c.b16 %v855, %v854
      %v862 = vpack.c.b16 %v857, %v856
      %v863 = vpack.c.b16 %v859, %v858
      %v869 = vsel %vm601, %v824, 0
      %v872 = vsel %vm601, %v825, 0
      %v875 = vsel %vm601, %v826, 0
      %v878 = vsel %vm601, %v827, 0
      %v881 = vsel %vm601, %v828, 0
      %v884 = vsel %vm601, %v829, 0
      %v887 = vsel %vm601, %v830, 0
      %v890 = vsel %vm601, %v831, 0
      %892 = vmatpush.bf16.msra.mxu0 0
      %893 = vmatpush.bf16.msra.mxu0 0
      %894 = vmatpush.bf16.msra.mxu0 0
      %895 = vmatpush.bf16.msra.mxu0 0
      %896 = vmatpush.bf16.msra.mxu0 %v863
      %897 = vmatpush.bf16.msra.mxu0 %v862
      %898 = vmatpush.bf16.msra.mxu0 %v861
      %899 = vmatpush.bf16.msra.mxu0 %v860
      %900 = vmatmul.bf16.gmra.mxu0 %v869
      %v901 = vpop.f32.mrf.mxu0
      %v902 = vadd.f32 %v842, %v901
      %v903 = vpop.f32.mrf.mxu0
      %v904 = vadd.f32 %v842, %v903
      %905 = vmatmul.bf16.gmra.mxu0 %v872
      %v906 = vpop.f32.mrf.mxu0
      %v907 = vadd.f32 %v842, %v906
      %v908 = vpop.f32.mrf.mxu0
      %v909 = vadd.f32 %v842, %v908
      %910 = vmatmul.bf16.gmra.mxu0 %v875
      %v911 = vpop.f32.mrf.mxu0
      %v912 = vadd.f32 %v842, %v911
      %v913 = vpop.f32.mrf.mxu0
      %v914 = vadd.f32 %v842, %v913
      %915 = vmatmul.bf16.gmra.mxu0 %v878
      %v916 = vpop.f32.mrf.mxu0
      %v917 = vadd.f32 %v842, %v916
      %v918 = vpop.f32.mrf.mxu0
      %v919 = vadd.f32 %v842, %v918
      %920 = vmatmul.bf16.gmra.mxu0 %v881
      %v921 = vpop.f32.mrf.mxu0
      %v922 = vadd.f32 %v842, %v921
      %v923 = vpop.f32.mrf.mxu0
      %v924 = vadd.f32 %v842, %v923
      %925 = vmatmul.bf16.gmra.mxu0 %v884
      %v926 = vpop.f32.mrf.mxu0
      %v927 = vadd.f32 %v842, %v926
      %v928 = vpop.f32.mrf.mxu0
      %v929 = vadd.f32 %v842, %v928
      %930 = vmatmul.bf16.gmra.mxu0 %v887
      %v931 = vpop.f32.mrf.mxu0
      %v932 = vadd.f32 %v842, %v931
      %v933 = vpop.f32.mrf.mxu0
      %v934 = vadd.f32 %v842, %v933
      %935 = vmatmul.bf16.gmra.mxu0 %v890
      %v936 = vpop.f32.mrf.mxu0
      %v937 = vadd.f32 %v842, %v936
      %v938 = vpop.f32.mrf.mxu0
      %v939 = vadd.f32 %v842, %v938
      %940 = vdwg.mxu0
      %v941 = vtanh.pop %v902
      %v942 = vtanh.pop %v904
      %v943 = vtanh.pop %v907
      %v944 = vtanh.pop %v909
      %v945 = vtanh.pop %v912
      %v946 = vtanh.pop %v914
      %v947 = vtanh.pop %v917
      %v948 = vtanh.pop %v919
      %v949 = vtanh.pop %v922
      %v950 = vtanh.pop %v924
      %v951 = vtanh.pop %v927
      %v952 = vtanh.pop %v929
      %v953 = vtanh.pop %v932
      %v954 = vtanh.pop %v934
      %v955 = vtanh.pop %v937
      %v956 = vtanh.pop %v939
      %v957 = vpack.c.bf16 %v942, %v941
      %v958 = vpack.c.bf16 %v944, %v943
      %v959 = vpack.c.bf16 %v946, %v945
      %v960 = vpack.c.bf16 %v948, %v947
      %v961 = vpack.c.bf16 %v950, %v949
      %v962 = vpack.c.bf16 %v952, %v951
      %v963 = vpack.c.bf16 %v954, %v953
      %v964 = vpack.c.bf16 %v956, %v955
      %v965 = vld [vmem:[%s9] sm:$0xf]
      %v966 = vld [vmem:[%s9 + $0x4] sm:$0xf]
      %v967 = vld [vmem:[%s9 + $0x8] sm:$0xf]
      %v968 = vld [vmem:[%s9 + $0xc] sm:$0xf]
      %v969 = vld [vmem:[%s9 + $0x10] sm:$0xf]
      %v970 = vld [vmem:[%s9 + $0x14] sm:$0xf]
      %v971 = vld [vmem:[%s9 + $0x18] sm:$0xf]
      %v972 = vld [vmem:[%s9 + $0x1c] sm:$0xf]
      %v973 = vld [vmem:[%s10] sm:$0x1]
      %v975 = vperm.slane %v973, 0
      %v985 = vunpack.c.l.b16 %v965
      %v986 = vunpack.c.l.b16 %v966
      %v987 = vunpack.c.l.b16 %v967
      %v988 = vunpack.c.l.b16 %v968
      %v989 = vunpack.c.l.b16 %v969
      %v990 = vunpack.c.l.b16 %v970
      %v991 = vunpack.c.l.b16 %v971
      %v992 = vunpack.c.l.b16 %v972
      %v993 = vpack.c.b16 %v986, %v985
      %v994 = vpack.c.b16 %v988, %v987
      %v995 = vpack.c.b16 %v990, %v989
      %v996 = vpack.c.b16 %v992, %v991
      %v1002 = vsel %vm601, %v957, 0
      %v1005 = vsel %vm601, %v958, 0
      %v1008 = vsel %vm601, %v959, 0
      %v1011 = vsel %vm601, %v960, 0
      %v1014 = vsel %vm601, %v961, 0
      %v1017 = vsel %vm601, %v962, 0
      %v1020 = vsel %vm601, %v963, 0
      %v1023 = vsel %vm601, %v964, 0
      %1025 = vmatpush.bf16.msra.mxu0 0
      %1026 = vmatpush.bf16.msra.mxu0 0
      %1027 = vmatpush.bf16.msra.mxu0 0
      %1028 = vmatpush.bf16.msra.mxu0 0
      %1029 = vmatpush.bf16.msra.mxu0 %v996
      %1030 = vmatpush.bf16.msra.mxu0 %v995
      %1031 = vmatpush.bf16.msra.mxu0 %v994
      %1032 = vmatpush.bf16.msra.mxu0 %v993
      %1033 = vmatmul.bf16.gmra.mxu0 %v1002
      %v1034 = vpop.f32.mrf.mxu0
      %v1035 = vadd.f32 %v975, %v1034
      %v1036 = vpop.f32.mrf.mxu0
      %v1037 = vadd.f32 %v975, %v1036
      %1038 = vmatmul.bf16.gmra.mxu0 %v1005
      %v1039 = vpop.f32.mrf.mxu0
      %v1040 = vadd.f32 %v975, %v1039
      %v1041 = vpop.f32.mrf.mxu0
      %v1042 = vadd.f32 %v975, %v1041
      %1043 = vmatmul.bf16.gmra.mxu0 %v1008
      %v1044 = vpop.f32.mrf.mxu0
      %v1045 = vadd.f32 %v975, %v1044
      %v1046 = vpop.f32.mrf.mxu0
      %v1047 = vadd.f32 %v975, %v1046
      %1048 = vmatmul.bf16.gmra.mxu0 %v1011
      %v1049 = vpop.f32.mrf.mxu0
      %v1050 = vadd.f32 %v975, %v1049
      %v1051 = vpop.f32.mrf.mxu0
      %v1052 = vadd.f32 %v975, %v1051
      %1053 = vmatmul.bf16.gmra.mxu0 %v1014
      %v1054 = vpop.f32.mrf.mxu0
      %v1055 = vadd.f32 %v975, %v1054
      %v1056 = vpop.f32.mrf.mxu0
      %v1057 = vadd.f32 %v975, %v1056
      %1058 = vmatmul.bf16.gmra.mxu0 %v1017
      %v1059 = vpop.f32.mrf.mxu0
      %v1060 = vadd.f32 %v975, %v1059
      %v1061 = vpop.f32.mrf.mxu0
      %v1062 = vadd.f32 %v975, %v1061
      %1063 = vmatmul.bf16.gmra.mxu0 %v1020
      %v1064 = vpop.f32.mrf.mxu0
      %v1065 = vadd.f32 %v975, %v1064
      %v1066 = vpop.f32.mrf.mxu0
      %v1067 = vadd.f32 %v975, %v1066
      %1068 = vmatmul.bf16.gmra.mxu0 %v1023
      %v1069 = vpop.f32.mrf.mxu0
      %v1070 = vadd.f32 %v975, %v1069
      %v1071 = vpop.f32.mrf.mxu0
      %v1072 = vadd.f32 %v975, %v1071
      %1073 = vdwg.mxu0
      %vm1074 = vcmask 130048
      %1075 = vst.msk [vmem:[%s388] sm:$0xff] %vm1074, %v1035
      %1076 = vst.msk [vmem:[%s388 + $0x8] sm:$0xff] %vm1074, %v1037
      %1077 = vst.msk [vmem:[%s388 + $0x10] sm:$0xff] %vm1074, %v1040
      %1078 = vst.msk [vmem:[%s388 + $0x18] sm:$0xff] %vm1074, %v1042
      %1079 = vst.msk [vmem:[%s388 + $0x20] sm:$0xff] %vm1074, %v1045
      %1080 = vst.msk [vmem:[%s388 + $0x28] sm:$0xff] %vm1074, %v1047
      %1081 = vst.msk [vmem:[%s388 + $0x30] sm:$0xff] %vm1074, %v1050
      %1082 = vst.msk [vmem:[%s388 + $0x38] sm:$0xff] %vm1074, %v1052
      %1083 = vst.msk [vmem:[%s388 + $0x40] sm:$0xff] %vm1074, %v1055
      %1084 = vst.msk [vmem:[%s388 + $0x48] sm:$0xff] %vm1074, %v1057
      %1085 = vst.msk [vmem:[%s388 + $0x50] sm:$0xff] %vm1074, %v1060
      %1086 = vst.msk [vmem:[%s388 + $0x58] sm:$0xff] %vm1074, %v1062
      %1087 = vst.msk [vmem:[%s388 + $0x60] sm:$0xff] %vm1074, %v1065
      %1088 = vst.msk [vmem:[%s388 + $0x68] sm:$0xff] %vm1074, %v1067
      %1089 = vst.msk [vmem:[%s388 + $0x70] sm:$0xff] %vm1074, %v1070
      %1090 = vst.msk [vmem:[%s388 + $0x78] sm:$0xff] %vm1074, %v1072
      %s1091 = smul.u32 16, %s22
      %p1092 = scmp.lt.s32.totalorder %s1091, 31
      %s1093 = scalar_select %p1092, %s1091, 31
      %s1094 = smul.addr %s1093, 8
      %s1095 = scalar_lea.vmem %s11, %s1094
      // Predicated region
      $region65: #{net5_forward.1} parent=63 // pred_check
        %p1096 = pneg %p276
      $region66: #{net5_forward.1} parent=63 // pred_check_branch
        %1098 = sbr.rel (%p1096) target = $region68
      $region67: #{net5_forward.1} parent=63 // pred_region
        %s1099 = smul.u32 16, %s22
      $region68: #{net5_forward.1} parent=63 // pred_fallthru
        _
    $region64: #{net5_forward.1} parent=5 // pred_fallthru
      _
    %p1100 = scmp.le.s32.totalorder 2, %s17
    // Predicated region
    $region69: #{net5_forward.1} parent=5 // pred_check
      %p1101 = pneg %p1100
    $region70: #{net5_forward.1} parent=5 // pred_check_branch
      %1103 = sbr.rel (%p1101) target = $region72
    $region71: #{net5_forward.1} parent=5 // pred_region
      %s1104 = ssub.s32 %s17, 2
      // Predicated region
      $region73: #{net5_forward.1} parent=71 // pred_check
        %p1105 = pneg %p282
      $region74: #{net5_forward.1} parent=71 // pred_check_branch
        %1107 = sbr.rel (%p1105) target = $region76
      $region75: #{net5_forward.1} parent=71 // pred_region
        %s1108 = smul.u32 16, %s23
        %p1109 = scmp.lt.s32.totalorder %s1108, 31
        %s1110 = scalar_select %p1109, %s1108, 31
        %s1111 = smul.addr %s1110, 8
        %s1112 = scalar_lea.vmem %s11, %s1111
      $region76: #{net5_forward.1} parent=71 // pred_fallthru
        _
    $region72: #{net5_forward.1} parent=5 // pred_fallthru
      _
  $region6: #{net5_forward.1} parent=0 // loop_footer
    %s21 = sadd.s32 1, %s17
  $region7: #{net5_forward.1} parent=0 // loop_footer_branch
    %16 = sbr.rel target = $region3
  $region8: #{net5_forward.1} parent=0 // loop_exit
    _

</llo_original>
